<compile_context>
chip_gen: v7x
topology: tpu7x:2x2x1
jax: 0.10.0
libtpu: 0.0.40
codegen_flags: <defaults>
</compile_context>

<pallas_src>
import functools

import jax
import jax.numpy as jnp
from jax.experimental import pallas as pl
from jax.experimental.pallas import tpu as pltpu


def _round_up(x, m):
    return -(-x // m) * m


def _lane_occupancy(w):
    return w / float(_round_up(w, 128))


def _choose_fold(h, t, w_cap=8192):
    """Fold `g` whole h-rows into the lane dim so lanes stay dense for small t."""
    best_g, best_occ = 1, _lane_occupancy(t)
    for g in range(2, h + 1):
        if h % g or g * t > w_cap:
            continue
        occ = _lane_occupancy(g * t)
        if occ > best_occ + 1e-9:        # strict: prefer the smallest W at ties
            best_g, best_occ = g, occ
    return best_g


@functools.lru_cache(maxsize=None)
def _vmem_budget():
    """(tile working-set budget, explicit vmem limit) -- generation aware."""
    cap = 64 * 1024 * 1024               # conservative fallback (v7x-sized VMEM)
    try:
        cap = int(getattr(pltpu.get_tpu_info(), "vmem_capacity_bytes", cap))
    except Exception:
        pass
    if cap >= 128 * 1024 * 1024:         # v5e / v6e class (128 MiB physical)
        return 24 * 1024 * 1024, 48 * 1024 * 1024
    return 16 * 1024 * 1024, 32 * 1024 * 1024   # v7x (64 MiB) or unknown


def _kl_loss_kernel(m_t_ref, logs_t_ref, m_s_ref, logs_s_ref, mask_ref,
                    num_ref, den_ref, kl_acc_ref, msk_acc_ref, *,
                    rows_h, block_rows, mask_per_h):
    hi = pl.program_id(1)

    @pl.when(hi == 0)
    def _init():
        kl_acc_ref[...] = jnp.zeros_like(kl_acc_ref)
        msk_acc_ref[...] = jnp.zeros_like(msk_acc_ref)

    m_t = m_t_ref[...].astype(jnp.float32)
    logs_t = logs_t_ref[...].astype(jnp.float32)
    m_s = m_s_ref[...].astype(jnp.float32)
    logs_s = logs_s_ref[...].astype(jnp.float32)
    mask = mask_ref[...].astype(jnp.float32)     # (1, W) or (block_rows, W)

    # Divide-free KL (mathematically identical to the torch reference).
    diff = m_s - m_t
    kl = (logs_t - logs_s - 0.5
          + 0.5 * jnp.exp(-2.0 * logs_t) * (jnp.exp(2.0 * logs_s) + diff * diff))
    masked_kl = kl * mask                        # broadcasts over sublanes if (1, W)

    ragged = rows_h % block_rows != 0
    if ragged:
        # Ragged final h-block: overhang rows hold undefined buffer data.
        # Select (not multiply) so NaN/Inf garbage cannot reach the sums.
        row_ids = jax.lax.broadcasted_iota(jnp.int32, (block_rows, 1), 0)
        valid = (row_ids + hi * block_rows) < rows_h
        masked_kl = jnp.where(valid, masked_kl, 0.0)

    # Partial (sublane-only) reduce per step; the single cross-lane reduce to a
    # scalar happens once per batch entry in the epilogue.
    kl_acc_ref[...] = kl_acc_ref[...] + jnp.sum(masked_kl, axis=0, keepdims=True)

    if mask_per_h:
        # Mask block is (1, W), reused across all h tiles: count it once per b.
        @pl.when(hi == 0)
        def _acc_mask_once():
            msk_acc_ref[...] = msk_acc_ref[...] + mask
    else:
        msum = mask
        if ragged:
            msum = jnp.where(valid, msum, 0.0)
        msk_acc_ref[...] = msk_acc_ref[...] + jnp.sum(msum, axis=0, keepdims=True)

    @pl.when(hi == pl.num_programs(1) - 1)
    def _finalize():
        num_ref[...] = jnp.sum(kl_acc_ref[...], keepdims=True)
        den_ref[...] = jnp.sum(msk_acc_ref[...], keepdims=True)


@functools.partial(jax.jit, static_argnames=("block_rows",))
def kl_divergence_loss(m_t, logs_t, m_s, logs_s, z_mask, *, block_rows=None):
    m_t = jnp.asarray(m_t)
    logs_t = jnp.asarray(logs_t)
    m_s = jnp.asarray(m_s)
    logs_s = jnp.asarray(logs_s)
    zm = jnp.asarray(z_mask)

    b, h, t = m_t.shape

    # ---- Mask normalisation (torch semantics: denominator = sum(z_mask as given))
    if zm.dtype == jnp.bool_:
        zm = zm.astype(jnp.int8)          # cheap 1-byte stream; kernel upcasts
    if zm.ndim < 3:
        zm = zm.reshape((1,) * (3 - zm.ndim) + zm.shape)
    if (zm.ndim != 3 or zm.shape[0] not in (1, b)
            or zm.shape[1] not in (1, h) or zm.shape[2] not in (1, t)):
        raise ValueError(
            f"z_mask shape {jnp.asarray(z_mask).shape} is not broadcastable to {(b, h, t)}")
    den_scale = 1.0
    if zm.shape[2] == 1 and t != 1:
        zm = jnp.broadcast_to(zm, zm.shape[:2] + (t,))
        den_scale *= t
    mb, mh, _ = zm.shape

    # ---- Lane-dense fold: pack g whole h-rows into the lane dim (g | h).
    g = _choose_fold(h, t)
    W = g * t
    rows_h = h // g
    stats = [a.reshape(b, rows_h, W) for a in (m_t, logs_t, m_s, logs_s)]

    mask_per_h = (mh == 1)
    if mask_per_h:
        # Keep the mask un-broadcast over h: one tiny (1, W) block per batch,
        # reused across every h tile (same block index -> no re-fetch).
        mask_in = jnp.tile(zm, (1, 1, g)) if g > 1 else zm     # (mb, 1, W)
        den_scale *= g
    else:
        mask_in = zm.reshape(mb, rows_h, W)
    if mb == 1:
        den_scale *= b

    # ---- Tile sizing: memory bound, so take the biggest double-buffered block
    # that fits the generation-aware VMEM budget (lane-padded accounting).
    w_pad = _round_up(W, 128)
    row_bytes = sum(jnp.dtype(a.dtype).itemsize for a in stats) * w_pad
    if not mask_per_h:
        row_bytes += jnp.dtype(mask_in.dtype).itemsize * w_pad
    tile_budget, vmem_limit = _vmem_budget()
    cap_rows = max(8, tile_budget // (2 * row_bytes))
    th = cap_rows if block_rows is None else min(int(block_rows), cap_rows)
    if th >= rows_h:
        th = rows_h                       # full-extent block (always legal)
    else:
        th = max(8, (th // 8) * 8)        # sublane-aligned partial block

    n_h_tiles = pl.cdiv(rows_h, th)
    grid = (b, n_h_tiles)
    # TODO(synk): when rows_h*W is small and b is large, pack several batch
    # entries into one block (and for b == 1, split h across an explicit
    # parallel core axis) to keep per-step DMAs large on v7x's 3.2 TB/s HBM.

    stat_spec = pl.BlockSpec((None, th, W), lambda bi, hi: (bi, hi, 0))
    if mask_per_h:
        mask_spec = pl.BlockSpec(
            (None, 1, W), lambda bi, hi: (bi if mb == b else 0, 0, 0))
    else:
        mask_spec = pl.BlockSpec(
            (None, th, W), lambda bi, hi: (bi if mb == b else 0, hi, 0))
    out_spec = pl.BlockSpec((None, 1, 1), lambda bi, hi: (bi, 0, 0))

    kernel = functools.partial(_kl_loss_kernel, rows_h=rows_h, block_rows=th,
                               mask_per_h=mask_per_h)

    num_out, den_out = pl.pallas_call(
        kernel,
        out_shape=(jax.ShapeDtypeStruct((b, 1, 1), jnp.float32),
                   jax.ShapeDtypeStruct((b, 1, 1), jnp.float32)),
        grid_spec=pltpu.PrefetchScalarGridSpec(
            num_scalar_prefetch=0,
            grid=grid,
            in_specs=[stat_spec] * 4 + [mask_spec],
            out_specs=[out_spec, out_spec],
            scratch_shapes=[
                pltpu.VMEM((1, W), jnp.float32),   # per-lane running sum(kl*mask)
                pltpu.VMEM((1, W), jnp.float32),   # per-lane running sum(mask)
            ],
        ),
        compiler_params=pltpu.CompilerParams(
            dimension_semantics=("parallel", "arbitrary"),
            vmem_limit_bytes=vmem_limit,
        ),
    )(*stats, mask_in)

    # Tiny final combine (b partials) + torch-denominator rescale.
    return jnp.sum(num_out) / (jnp.sum(den_out) / den_scale)


def _reference(m_t, logs_t, m_s, logs_s, z_mask):
    m_t = m_t.astype(jnp.float32)
    logs_t = logs_t.astype(jnp.float32)
    m_s = m_s.astype(jnp.float32)
    logs_s = logs_s.astype(jnp.float32)
    z_mask = z_mask.astype(jnp.float32)
    kl = logs_t - logs_s - 0.5
    kl += 0.5 * (jnp.exp(2.0 * logs_s) + (m_s - m_t) ** 2) / jnp.exp(2.0 * logs_t)
    return jnp.sum(kl * z_mask) / jnp.sum(z_mask)


if __name__ == "__main__":
    key = jax.random.PRNGKey(0)
    k1, k2, k3, k4 = jax.random.split(key, 4)

    # --- Test 1: full-shape [b, h, t] f32 mask ------------------------------
    b, h, t = 2, 4, 16
    m_t = jax.random.normal(k1, (b, h, t), dtype=jnp.float32)
    logs_t = 0.1 * jax.random.normal(k2, (b, h, t), dtype=jnp.float32)
    m_s = jax.random.normal(k3, (b, h, t), dtype=jnp.float32)
    logs_s = 0.1 * jax.random.normal(k4, (b, h, t), dtype=jnp.float32)
    lengths = jnp.array([t, t - 4], dtype=jnp.int32)
    base_mask = (jnp.arange(t)[None, :] < lengths[:, None]).astype(jnp.float32)
    z_mask = jnp.broadcast_to(base_mask[:, None, :], (b, h, t))

    loss = jax.block_until_ready(kl_divergence_loss(m_t, logs_t, m_s, logs_s, z_mask))
    expected = _reference(m_t, logs_t, m_s, logs_s, z_mask)
    assert jnp.allclose(loss, expected, rtol=1e-5, atol=1e-5), (loss, expected)

    # --- Test 2: broadcastable [b, 1, t] mask (the usual VITS case) ---------
    b2, h2, t2 = 3, 5, 16
    m_t2 = jax.random.normal(k1, (b2, h2, t2), dtype=jnp.float32)
    logs_t2 = 0.1 * jax.random.normal(k2, (b2, h2, t2), dtype=jnp.float32)
    m_s2 = jax.random.normal(k3, (b2, h2, t2), dtype=jnp.float32)
    logs_s2 = 0.1 * jax.random.normal(k4, (b2, h2, t2), dtype=jnp.float32)
    mask2 = (jnp.arange(t2)[None, None, :] <
             jnp.array([t2, t2 - 3, t2 - 7])[:, None, None]).astype(jnp.float32)

    loss2 = jax.block_until_ready(
        kl_divergence_loss(m_t2, logs_t2, m_s2, logs_s2, mask2))
    expected2 = _reference(m_t2, logs_t2, m_s2, logs_s2, mask2)
    assert jnp.allclose(loss2, expected2, rtol=1e-5, atol=1e-5), (loss2, expected2)

    # --- Test 3: many h rows + [1, 1, t] mask; block_rows override forces a
    # ragged, multi-tile accumulation down the h axis -------------------------
    b3, h3, t3 = 2, 144, 16
    m_t3 = jax.random.normal(k1, (b3, h3, t3), dtype=jnp.float32)
    logs_t3 = 0.1 * jax.random.normal(k2, (b3, h3, t3), dtype=jnp.float32)
    m_s3 = jax.random.normal(k3, (b3, h3, t3), dtype=jnp.float32)
    logs_s3 = 0.1 * jax.random.normal(k4, (b3, h3, t3), dtype=jnp.float32)
    mask3 = (jnp.arange(t3)[None, None, :] < (t3 - 5)).astype(jnp.float32)

    loss3 = jax.block_until_ready(
        kl_divergence_loss(m_t3, logs_t3, m_s3, logs_s3, mask3, block_rows=8))
    expected3 = _reference(m_t3, logs_t3, m_s3, logs_s3, mask3)
    assert jnp.allclose(loss3, expected3, rtol=1e-5, atol=1e-5), (loss3, expected3)

    print("KERNEL_OK")
</pallas_src>

<mosaic_0001>
module attributes {stable_mosaic.version = 11 : i64} {
  func.func @_kl_loss_kernel(%arg0: i32, %arg1: i32, %arg2: memref<1x1x64xf32, #tpu.memory_space<vmem>>, %arg3: memref<1x1x64xf32, #tpu.memory_space<vmem>>, %arg4: memref<1x1x64xf32, #tpu.memory_space<vmem>>, %arg5: memref<1x1x64xf32, #tpu.memory_space<vmem>>, %arg6: memref<1x1x64xf32, #tpu.memory_space<vmem>>, %arg7: memref<1x1x1xf32, #tpu.memory_space<vmem>>, %arg8: memref<1x1x1xf32, #tpu.memory_space<vmem>>, %arg9: memref<1x64xf32, #tpu.memory_space<vmem>>, %arg10: memref<1x64xf32, #tpu.memory_space<vmem>>) attributes {dimension_semantics = [#tpu.dimension_semantics<parallel>, #tpu.dimension_semantics<arbitrary>], iteration_bounds = array<i64: 2, 1>, scalar_prefetch = 0 : i64, scratch_operands = 2 : i64, tpu.core_type = #tpu.core_type<tc>, window_params = [{transform_indices = @transform_0, window_bounds = array<i64: 1, 1, 64>}, {transform_indices = @transform_1, window_bounds = array<i64: 1, 1, 64>}, {transform_indices = @transform_2, window_bounds = array<i64: 1, 1, 64>}, {transform_indices = @transform_3, window_bounds = array<i64: 1, 1, 64>}, {transform_indices = @transform_4, window_bounds = array<i64: 1, 1, 64>}, {transform_indices = @transform_5, window_bounds = array<i64: 1, 1, 1>}, {transform_indices = @transform_6, window_bounds = array<i64: 1, 1, 1>}]} {
    %c0_i32 = arith.constant 0 : i32
    %0 = arith.cmpi eq, %arg1, %c0_i32 : i32
    %1 = arith.extui %0 : i1 to i32
    %c0_i32_0 = arith.constant 0 : i32
    %2 = arith.cmpi ne, %1, %c0_i32_0 : i32
    scf.if %2 {
      %cst_30 = arith.constant 0.000000e+00 : f32
      %43 = vector.broadcast %cst_30 : f32 to vector<1x64xf32>
      %c0_31 = arith.constant 0 : index
      %c0_32 = arith.constant 0 : index
      %44 = vector.load %arg9[%c0_31, %c0_32] : memref<1x64xf32, #tpu.memory_space<vmem>>, vector<1x64xf32>
      tpu.vector_store %arg9[%c0_31, %c0_32], %43 {strides = array<i32>} : memref<1x64xf32, #tpu.memory_space<vmem>>, vector<1x64xf32>,
      %cst_33 = arith.constant 0.000000e+00 : f32
      %45 = vector.broadcast %cst_33 : f32 to vector<1x64xf32>
      %c0_34 = arith.constant 0 : index
      %c0_35 = arith.constant 0 : index
      %46 = vector.load %arg10[%c0_34, %c0_35] : memref<1x64xf32, #tpu.memory_space<vmem>>, vector<1x64xf32>
      tpu.vector_store %arg10[%c0_34, %c0_35], %45 {strides = array<i32>} : memref<1x64xf32, #tpu.memory_space<vmem>>, vector<1x64xf32>,
    } else {
    }
    %c0 = arith.constant 0 : index
    %c0_1 = arith.constant 0 : index
    %c0_2 = arith.constant 0 : index
    %3 = vector.load %arg2[%c0, %c0_1, %c0_2] : memref<1x1x64xf32, #tpu.memory_space<vmem>>, vector<1x1x64xf32>
    %4 = vector.shape_cast %3 : vector<1x1x64xf32> to vector<1x64xf32>
    %c0_3 = arith.constant 0 : index
    %c0_4 = arith.constant 0 : index
    %c0_5 = arith.constant 0 : index
    %5 = vector.load %arg3[%c0_3, %c0_4, %c0_5] : memref<1x1x64xf32, #tpu.memory_space<vmem>>, vector<1x1x64xf32>
    %6 = vector.shape_cast %5 : vector<1x1x64xf32> to vector<1x64xf32>
    %c0_6 = arith.constant 0 : index
    %c0_7 = arith.constant 0 : index
    %c0_8 = arith.constant 0 : index
    %7 = vector.load %arg4[%c0_6, %c0_7, %c0_8] : memref<1x1x64xf32, #tpu.memory_space<vmem>>, vector<1x1x64xf32>
    %8 = vector.shape_cast %7 : vector<1x1x64xf32> to vector<1x64xf32>
    %c0_9 = arith.constant 0 : index
    %c0_10 = arith.constant 0 : index
    %c0_11 = arith.constant 0 : index
    %9 = vector.load %arg5[%c0_9, %c0_10, %c0_11] : memref<1x1x64xf32, #tpu.memory_space<vmem>>, vector<1x1x64xf32>
    %10 = vector.shape_cast %9 : vector<1x1x64xf32> to vector<1x64xf32>
    %c0_12 = arith.constant 0 : index
    %c0_13 = arith.constant 0 : index
    %c0_14 = arith.constant 0 : index
    %11 = vector.load %arg6[%c0_12, %c0_13, %c0_14] : memref<1x1x64xf32, #tpu.memory_space<vmem>>, vector<1x1x64xf32>
    %12 = vector.shape_cast %11 : vector<1x1x64xf32> to vector<1x64xf32>
    %13 = arith.subf %8, %4 : vector<1x64xf32>
    %14 = arith.subf %6, %10 : vector<1x64xf32>
    %cst = arith.constant 5.000000e-01 : f32
    %15 = vector.broadcast %cst : f32 to vector<1x64xf32>
    %16 = arith.subf %14, %15 : vector<1x64xf32>
    %cst_15 = arith.constant -2.000000e+00 : f32
    %17 = vector.broadcast %cst_15 : f32 to vector<1x64xf32>
    %18 = arith.mulf %17, %6 : vector<1x64xf32>
    %19 = math.exp %18 : vector<1x64xf32>
    %cst_16 = arith.constant 5.000000e-01 : f32
    %20 = vector.broadcast %cst_16 : f32 to vector<1x64xf32>
    %21 = arith.mulf %20, %19 : vector<1x64xf32>
    %cst_17 = arith.constant 2.000000e+00 : f32
    %22 = vector.broadcast %cst_17 : f32 to vector<1x64xf32>
    %23 = arith.mulf %22, %10 : vector<1x64xf32>
    %24 = math.exp %23 : vector<1x64xf32>
    %25 = arith.mulf %13, %13 : vector<1x64xf32>
    %26 = arith.addf %24, %25 : vector<1x64xf32>
    %27 = arith.mulf %21, %26 : vector<1x64xf32>
    %28 = arith.addf %16, %27 : vector<1x64xf32>
    %29 = arith.mulf %28, %12 : vector<1x64xf32>
    %c0_18 = arith.constant 0 : index
    %c0_19 = arith.constant 0 : index
    %30 = vector.load %arg9[%c0_18, %c0_19] : memref<1x64xf32, #tpu.memory_space<vmem>>, vector<1x64xf32>
    %cst_20 = arith.constant dense<0.000000e+00> : vector<64xf32>
    %31 = vector.multi_reduction <add>, %29, %cst_20 [0] : vector<1x64xf32> to vector<64xf32>
    %32 = vector.shape_cast %31 : vector<64xf32> to vector<1x64xf32>
    %33 = arith.addf %30, %32 : vector<1x64xf32>
    %c0_21 = arith.constant 0 : index
    %c0_22 = arith.constant 0 : index
    %34 = vector.load %arg9[%c0_21, %c0_22] : memref<1x64xf32, #tpu.memory_space<vmem>>, vector<1x64xf32>
    tpu.vector_store %arg9[%c0_21, %c0_22], %33 {strides = array<i32>} : memref<1x64xf32, #tpu.memory_space<vmem>>, vector<1x64xf32>,
    %c0_23 = arith.constant 0 : index
    %c0_24 = arith.constant 0 : index
    %35 = vector.load %arg10[%c0_23, %c0_24] : memref<1x64xf32, #tpu.memory_space<vmem>>, vector<1x64xf32>
    %cst_25 = arith.constant dense<0.000000e+00> : vector<64xf32>
    %36 = vector.multi_reduction <add>, %12, %cst_25 [0] : vector<1x64xf32> to vector<64xf32>
    %37 = vector.shape_cast %36 : vector<64xf32> to vector<1x64xf32>
    %38 = arith.addf %35, %37 : vector<1x64xf32>
    %c0_26 = arith.constant 0 : index
    %c0_27 = arith.constant 0 : index
    %39 = vector.load %arg10[%c0_26, %c0_27] : memref<1x64xf32, #tpu.memory_space<vmem>>, vector<1x64xf32>
    tpu.vector_store %arg10[%c0_26, %c0_27], %38 {strides = array<i32>} : memref<1x64xf32, #tpu.memory_space<vmem>>, vector<1x64xf32>,
    %c0_i32_28 = arith.constant 0 : i32
    %40 = arith.cmpi eq, %arg1, %c0_i32_28 : i32
    %41 = arith.extui %40 : i1 to i32
    %c0_i32_29 = arith.constant 0 : i32
    %42 = arith.cmpi ne, %41, %c0_i32_29 : i32
    scf.if %42 {
      %c0_30 = arith.constant 0 : index
      %c0_31 = arith.constant 0 : index
      %43 = vector.load %arg9[%c0_30, %c0_31] : memref<1x64xf32, #tpu.memory_space<vmem>>, vector<1x64xf32>
      %44 = vector.shape_cast %43 : vector<1x64xf32> to vector<1x1x64xf32>
      %cst_32 = arith.constant dense<0.000000e+00> : vector<1xf32>
      %45 = vector.multi_reduction <add>, %44, %cst_32 [1, 2] : vector<1x1x64xf32> to vector<1xf32>
      %46 = vector.shape_cast %45 : vector<1xf32> to vector<1x1x1xf32>
      %47 = vector.extract %46[0, 0, 0] : f32 from vector<1x1x1xf32>
      %48 = vector.broadcast %47 : f32 to vector<1x1xf32>
      %c0_33 = arith.constant 0 : index
      %c0_34 = arith.constant 0 : index
      %c0_35 = arith.constant 0 : index
      %49 = vector.load %arg7[%c0_33, %c0_34, %c0_35] : memref<1x1x1xf32, #tpu.memory_space<vmem>>, vector<1x1x1xf32>
      %50 = vector.shape_cast %49 : vector<1x1x1xf32> to vector<1x1xf32>
      %51 = vector.shape_cast %48 : vector<1x1xf32> to vector<1x1x1xf32>
      tpu.vector_store %arg7[%c0_33, %c0_34, %c0_35], %51 {strides = array<i32>} : memref<1x1x1xf32, #tpu.memory_space<vmem>>, vector<1x1x1xf32>,
      %c0_36 = arith.constant 0 : index
      %c0_37 = arith.constant 0 : index
      %52 = vector.load %arg10[%c0_36, %c0_37] : memref<1x64xf32, #tpu.memory_space<vmem>>, vector<1x64xf32>
      %53 = vector.shape_cast %52 : vector<1x64xf32> to vector<1x1x64xf32>
      %cst_38 = arith.constant dense<0.000000e+00> : vector<1xf32>
      %54 = vector.multi_reduction <add>, %53, %cst_38 [1, 2] : vector<1x1x64xf32> to vector<1xf32>
      %55 = vector.shape_cast %54 : vector<1xf32> to vector<1x1x1xf32>
      %56 = vector.extract %55[0, 0, 0] : f32 from vector<1x1x1xf32>
      %57 = vector.broadcast %56 : f32 to vector<1x1xf32>
      %c0_39 = arith.constant 0 : index
      %c0_40 = arith.constant 0 : index
      %c0_41 = arith.constant 0 : index
      %58 = vector.load %arg8[%c0_39, %c0_40, %c0_41] : memref<1x1x1xf32, #tpu.memory_space<vmem>>, vector<1x1x1xf32>
      %59 = vector.shape_cast %58 : vector<1x1x1xf32> to vector<1x1xf32>
      %60 = vector.shape_cast %57 : vector<1x1xf32> to vector<1x1x1xf32>
      tpu.vector_store %arg8[%c0_39, %c0_40, %c0_41], %60 {strides = array<i32>} : memref<1x1x1xf32, #tpu.memory_space<vmem>>, vector<1x1x1xf32>,
    } else {
    }
    return
  }
  func.func @transform_0(%arg0: i32, %arg1: i32) -> (i32, i32, i32) {
    %c0_i32 = arith.constant 0 : i32
    %c0_i32_0 = arith.constant 0 : i32
    return %arg0, %arg1, %c0_i32 : i32, i32, i32
  }
  func.func @transform_1(%arg0: i32, %arg1: i32) -> (i32, i32, i32) {
    %c0_i32 = arith.constant 0 : i32
    %c0_i32_0 = arith.constant 0 : i32
    return %arg0, %arg1, %c0_i32 : i32, i32, i32
  }
  func.func @transform_2(%arg0: i32, %arg1: i32) -> (i32, i32, i32) {
    %c0_i32 = arith.constant 0 : i32
    %c0_i32_0 = arith.constant 0 : i32
    return %arg0, %arg1, %c0_i32 : i32, i32, i32
  }
  func.func @transform_3(%arg0: i32, %arg1: i32) -> (i32, i32, i32) {
    %c0_i32 = arith.constant 0 : i32
    %c0_i32_0 = arith.constant 0 : i32
    return %arg0, %arg1, %c0_i32 : i32, i32, i32
  }
  func.func @transform_4(%arg0: i32, %arg1: i32) -> (i32, i32, i32) {
    %c0_i32 = arith.constant 0 : i32
    %c0_i32_0 = arith.constant 0 : i32
    return %arg0, %arg1, %c0_i32 : i32, i32, i32
  }
  func.func @transform_5(%arg0: i32, %arg1: i32) -> (i32, i32, i32) {
    %c0_i32 = arith.constant 0 : i32
    %c0_i32_0 = arith.constant 0 : i32
    %c0_i32_1 = arith.constant 0 : i32
    return %arg0, %c0_i32, %c0_i32_0 : i32, i32, i32
  }
  func.func @transform_6(%arg0: i32, %arg1: i32) -> (i32, i32, i32) {
    %c0_i32 = arith.constant 0 : i32
    %c0_i32_0 = arith.constant 0 : i32
    %c0_i32_1 = arith.constant 0 : i32
    return %arg0, %c0_i32, %c0_i32_0 : i32, i32, i32
  }
}

</mosaic_0001>

<llo_original>
// kernel: kl_divergence_loss.1
$region0: #{kl_divergence_loss.1}
  #allocation0 [shape = 'u32[]', space=smem, size = 0x4, offset = 0x4, fixed_abs, tag = 'smem constant byte address 0x4 - core index']
  #allocation1 [shape = 'u32[144,128]{1,0:T(1,128)}', space=vmem, size = 0x12000, scoped, tag = 'internal scratch']
  #allocation2 [shape = 'f32[1,64]{1,0:T(1,128)}', space=vmem, size = 0x200, scoped, tag = 'scratch operand']
  #allocation3 [shape = 'f32[1,64]{1,0:T(1,128)}', space=vmem, size = 0x200, scoped, tag = 'scratch operand']
  %s0 = inlined_call_operand.vmem [shape: f32[2,1,64], index: 0, kind: input, shape index: {}]
  %s1 = inlined_call_operand.vmem [shape: f32[2,1,64], index: 1, kind: input, shape index: {}]
  %s2 = inlined_call_operand.vmem [shape: f32[2,1,64], index: 2, kind: input, shape index: {}]
  %s3 = inlined_call_operand.vmem [shape: f32[2,1,64], index: 3, kind: input, shape index: {}]
  %s4 = inlined_call_operand.vmem [shape: f32[2,1,64], index: 4, kind: input, shape index: {}]
  %s5 = inlined_call_operand.vmem [shape: f32[2,1,1], index: 5, kind: output, shape index: {0}]
  %s6 = inlined_call_operand.vmem [shape: f32[2,1,1], index: 6, kind: output, shape index: {1}]
  %7 = xla_tuple %s5, %s6
  %s8 = sld [smem:[#allocation0]]
  $region69: #{kl_divergence_loss.1} parent=0
    _
  %s10 = ssub.s32 1, %s8
  %s11 = scalar_select 0, %s10, %s8
  loop: start=0, step=1, limit=4
  $region2: #{kl_divergence_loss.1} parent=0 // loop_pre_header
    _
  $region3: #{kl_divergence_loss.1} parent=0 // loop_header
    %s13 = sphi 0, %s17
    %p14 = scmp.ge.s32.totalorder %s13, 4
    %s20 = sphi 0, %s32
    %s21 = sphi 0, %s28
    %s22 = sphi 0, %s20
    %s23 = sphi 0, %s21
    %s24 = sphi 0, %s22
    %s25 = sphi 0, %s23
    %s37 = sphi 0, %s39
    %s40 = sphi 0, %s37
    %s41 = sphi 0, %s40
    %s57 = sphi 0, %s41
    %s65 = sphi 0, %s67
    %s68 = sphi 0, %s65
    %s69 = sphi 0, %s68
    %s85 = sphi 0, %s69
    %s93 = sphi 0, %s95
    %s96 = sphi 0, %s93
    %s97 = sphi 0, %s96
    %s113 = sphi 0, %s97
    %s121 = sphi 0, %s123
    %s124 = sphi 0, %s121
    %s125 = sphi 0, %s124
    %s141 = sphi 0, %s125
    %s149 = sphi 0, %s151
    %s152 = sphi 0, %s149
    %s153 = sphi 0, %s152
    %s169 = sphi 0, %s153
    %s175 = sphi 0, %s177
    %s178 = sphi 0, %s175
    %s179 = sphi 0, %s178
    %s195 = sphi 0, %s179
    %s201 = sphi 0, %s203
    %s204 = sphi 0, %s201
    %s205 = sphi 0, %s204
    %s221 = sphi 0, %s205
  $region4: #{kl_divergence_loss.1} parent=0 // loop_header_branch
    %16 = sbr.rel (%p14) target = $region8
  $region5: #{kl_divergence_loss.1} parent=0 // loop_body
    %s18 = ssub.s32 %s13, 1
    %s19 = ssub.s32 %s13, 2
    %s26 = sadd.s32 1, %s21
    %p27 = scmp.ge.s32.totalorder %s26, 1
    %s28 = scalar_select %p27, 0, %s26
    %s29 = sadd.s32 1, %s20
    %s30 = scalar_select %p27, %s29, %s20
    %p31 = scmp.ge.s32.totalorder %s30, 2
    %s32 = scalar_select %p31, 0, %s30
    %s33 = ssub.s32 %s20, %s32
    %s34 = ssub.s32 %s21, %s28
    %s35 = sor.u32 %s33, %s34
    %p36 = scmp.eq.s32.totalorder %s35, 0
    %s38 = sadd.s32 %s37, 1
    %s39 = scalar_select %p36, %s37, %s38
    %p42 = pneg %p36
    %p43 = scmp.eq.s32.totalorder %s13, 1
    %p44 = por %p42, %p43
    %p45 = scmp.ne.s32.totalorder %s37, %s40
    %p46 = scmp.eq.s32.totalorder %s13, 0
    %p47 = por %p45, %p46
    %p48 = scmp.ne.s32.totalorder %s37, %s40
    %p49 = scmp.eq.s32.totalorder %s18, 1
    %p50 = por %p48, %p49
    %p51 = scmp.ne.s32.totalorder %s40, %s41
    %p52 = scmp.eq.s32.totalorder %s18, 0
    %p53 = por %p51, %p52
    %p54 = scmp.ne.s32.totalorder %s40, %s41
    %p55 = scmp.eq.s32.totalorder %s19, 1
    %p56 = por %p54, %p55
    %p58 = scmp.ne.s32.totalorder %s41, %s57
    %p59 = scmp.eq.s32.totalorder %s19, 0
    %p60 = por %p58, %p59
    %s61 = ssub.s32 %s20, %s32
    %s62 = ssub.s32 %s21, %s28
    %s63 = sor.u32 %s61, %s62
    %p64 = scmp.eq.s32.totalorder %s63, 0
    %s66 = sadd.s32 %s65, 1
    %s67 = scalar_select %p64, %s65, %s66
    %p70 = pneg %p64
    %p71 = scmp.eq.s32.totalorder %s13, 1
    %p72 = por %p70, %p71
    %p73 = scmp.ne.s32.totalorder %s65, %s68
    %p74 = scmp.eq.s32.totalorder %s13, 0
    %p75 = por %p73, %p74
    %p76 = scmp.ne.s32.totalorder %s65, %s68
    %p77 = scmp.eq.s32.totalorder %s18, 1
    %p78 = por %p76, %p77
    %p79 = scmp.ne.s32.totalorder %s68, %s69
    %p80 = scmp.eq.s32.totalorder %s18, 0
    %p81 = por %p79, %p80
    %p82 = scmp.ne.s32.totalorder %s68, %s69
    %p83 = scmp.eq.s32.totalorder %s19, 1
    %p84 = por %p82, %p83
    %p86 = scmp.ne.s32.totalorder %s69, %s85
    %p87 = scmp.eq.s32.totalorder %s19, 0
    %p88 = por %p86, %p87
    %s89 = ssub.s32 %s20, %s32
    %s90 = ssub.s32 %s21, %s28
    %s91 = sor.u32 %s89, %s90
    %p92 = scmp.eq.s32.totalorder %s91, 0
    %s94 = sadd.s32 %s93, 1
    %s95 = scalar_select %p92, %s93, %s94
    %p98 = pneg %p92
    %p99 = scmp.eq.s32.totalorder %s13, 1
    %p100 = por %p98, %p99
    %p101 = scmp.ne.s32.totalorder %s93, %s96
    %p102 = scmp.eq.s32.totalorder %s13, 0
    %p103 = por %p101, %p102
    %p104 = scmp.ne.s32.totalorder %s93, %s96
    %p105 = scmp.eq.s32.totalorder %s18, 1
    %p106 = por %p104, %p105
    %p107 = scmp.ne.s32.totalorder %s96, %s97
    %p108 = scmp.eq.s32.totalorder %s18, 0
    %p109 = por %p107, %p108
    %p110 = scmp.ne.s32.totalorder %s96, %s97
    %p111 = scmp.eq.s32.totalorder %s19, 1
    %p112 = por %p110, %p111
    %p114 = scmp.ne.s32.totalorder %s97, %s113
    %p115 = scmp.eq.s32.totalorder %s19, 0
    %p116 = por %p114, %p115
    %s117 = ssub.s32 %s20, %s32
    %s118 = ssub.s32 %s21, %s28
    %s119 = sor.u32 %s117, %s118
    %p120 = scmp.eq.s32.totalorder %s119, 0
    %s122 = sadd.s32 %s121, 1
    %s123 = scalar_select %p120, %s121, %s122
    %p126 = pneg %p120
    %p127 = scmp.eq.s32.totalorder %s13, 1
    %p128 = por %p126, %p127
    %p129 = scmp.ne.s32.totalorder %s121, %s124
    %p130 = scmp.eq.s32.totalorder %s13, 0
    %p131 = por %p129, %p130
    %p132 = scmp.ne.s32.totalorder %s121, %s124
    %p133 = scmp.eq.s32.totalorder %s18, 1
    %p134 = por %p132, %p133
    %p135 = scmp.ne.s32.totalorder %s124, %s125
    %p136 = scmp.eq.s32.totalorder %s18, 0
    %p137 = por %p135, %p136
    %p138 = scmp.ne.s32.totalorder %s124, %s125
    %p139 = scmp.eq.s32.totalorder %s19, 1
    %p140 = por %p138, %p139
    %p142 = scmp.ne.s32.totalorder %s125, %s141
    %p143 = scmp.eq.s32.totalorder %s19, 0
    %p144 = por %p142, %p143
    %s145 = ssub.s32 %s20, %s32
    %s146 = ssub.s32 %s21, %s28
    %s147 = sor.u32 %s145, %s146
    %p148 = scmp.eq.s32.totalorder %s147, 0
    %s150 = sadd.s32 %s149, 1
    %s151 = scalar_select %p148, %s149, %s150
    %p154 = pneg %p148
    %p155 = scmp.eq.s32.totalorder %s13, 1
    %p156 = por %p154, %p155
    %p157 = scmp.ne.s32.totalorder %s149, %s152
    %p158 = scmp.eq.s32.totalorder %s13, 0
    %p159 = por %p157, %p158
    %p160 = scmp.ne.s32.totalorder %s149, %s152
    %p161 = scmp.eq.s32.totalorder %s18, 1
    %p162 = por %p160, %p161
    %p163 = scmp.ne.s32.totalorder %s152, %s153
    %p164 = scmp.eq.s32.totalorder %s18, 0
    %p165 = por %p163, %p164
    %p166 = scmp.ne.s32.totalorder %s152, %s153
    %p167 = scmp.eq.s32.totalorder %s19, 1
    %p168 = por %p166, %p167
    %p170 = scmp.ne.s32.totalorder %s153, %s169
    %p171 = scmp.eq.s32.totalorder %s19, 0
    %p172 = por %p170, %p171
    %s173 = ssub.s32 %s20, %s32
    %p174 = scmp.eq.s32.totalorder %s173, 0
    %s176 = sadd.s32 %s175, 1
    %s177 = scalar_select %p174, %s175, %s176
    %p180 = pneg %p174
    %p181 = scmp.eq.s32.totalorder %s13, 1
    %p182 = por %p180, %p181
    %p183 = scmp.ne.s32.totalorder %s175, %s178
    %p184 = scmp.eq.s32.totalorder %s13, 0
    %p185 = por %p183, %p184
    %p186 = scmp.ne.s32.totalorder %s175, %s178
    %p187 = scmp.eq.s32.totalorder %s18, 1
    %p188 = por %p186, %p187
    %p189 = scmp.ne.s32.totalorder %s178, %s179
    %p190 = scmp.eq.s32.totalorder %s18, 0
    %p191 = por %p189, %p190
    %p192 = scmp.ne.s32.totalorder %s178, %s179
    %p193 = scmp.eq.s32.totalorder %s19, 1
    %p194 = por %p192, %p193
    %p196 = scmp.ne.s32.totalorder %s179, %s195
    %p197 = scmp.eq.s32.totalorder %s19, 0
    %p198 = por %p196, %p197
    %s199 = ssub.s32 %s20, %s32
    %p200 = scmp.eq.s32.totalorder %s199, 0
    %s202 = sadd.s32 %s201, 1
    %s203 = scalar_select %p200, %s201, %s202
    %p206 = pneg %p200
    %p207 = scmp.eq.s32.totalorder %s13, 1
    %p208 = por %p206, %p207
    %p209 = scmp.ne.s32.totalorder %s201, %s204
    %p210 = scmp.eq.s32.totalorder %s13, 0
    %p211 = por %p209, %p210
    %p212 = scmp.ne.s32.totalorder %s201, %s204
    %p213 = scmp.eq.s32.totalorder %s18, 1
    %p214 = por %p212, %p213
    %p215 = scmp.ne.s32.totalorder %s204, %s205
    %p216 = scmp.eq.s32.totalorder %s18, 0
    %p217 = por %p215, %p216
    %p218 = scmp.ne.s32.totalorder %s204, %s205
    %p219 = scmp.eq.s32.totalorder %s19, 1
    %p220 = por %p218, %p219
    %p222 = scmp.ne.s32.totalorder %s205, %s221
    %p223 = scmp.eq.s32.totalorder %s19, 0
    %p224 = por %p222, %p223
    %p225 = scmp.le.s32.totalorder 1, %s13
    %p226 = scmp.lt.s32.totalorder %s13, 3
    %p227 = pnand %p225, %p226
    %p228 = pneg %p227
    // Predicated region
    $region9: #{kl_divergence_loss.1} parent=5 // pred_check
      _
    $region10: #{kl_divergence_loss.1} parent=5 // pred_check_branch
      %230 = sbr.rel (%p227) target = $region12
    $region11: #{kl_divergence_loss.1} parent=5 // pred_region
      %s231 = ssub.s32 %s13, 1
    $region12: #{kl_divergence_loss.1} parent=5 // pred_fallthru
      _
    %p232 = scmp.lt.s32.totalorder %s13, 2
    // Predicated region
    $region13: #{kl_divergence_loss.1} parent=5 // pred_check
      %p233 = pneg %p232
    $region14: #{kl_divergence_loss.1} parent=5 // pred_check_branch
      %235 = sbr.rel (%p233) target = $region16
    $region15: #{kl_divergence_loss.1} parent=5 // pred_region
      // Predicated region
      $region17: #{kl_divergence_loss.1} parent=15 // pred_check
        %p236 = pneg %p47
      $region18: #{kl_divergence_loss.1} parent=15 // pred_check_branch
        %238 = sbr.rel (%p236) target = $region20
      $region19: #{kl_divergence_loss.1} parent=15 // pred_region
        %p239 = scmp.lt.s32.totalorder %s20, 1
        %s240 = scalar_select %p239, %s20, 1
        %p241 = scmp.lt.s32.totalorder %s21, 0
        %s242 = scalar_select %p241, %s21, 0
        %s243 = sadd.s32 %s242, %s240
        %s244 = scalar_lea.vmem %s0, %s243
      $region20: #{kl_divergence_loss.1} parent=15 // pred_fallthru
        _
      // Predicated region
      $region21: #{kl_divergence_loss.1} parent=15 // pred_check
        %p245 = pneg %p75
      $region22: #{kl_divergence_loss.1} parent=15 // pred_check_branch
        %247 = sbr.rel (%p245) target = $region24
      $region23: #{kl_divergence_loss.1} parent=15 // pred_region
        %p248 = scmp.lt.s32.totalorder %s20, 1
        %s249 = scalar_select %p248, %s20, 1
        %p250 = scmp.lt.s32.totalorder %s21, 0
        %s251 = scalar_select %p250, %s21, 0
        %s252 = sadd.s32 %s251, %s249
        %s253 = scalar_lea.vmem %s1, %s252
      $region24: #{kl_divergence_loss.1} parent=15 // pred_fallthru
        _
      // Predicated region
      $region25: #{kl_divergence_loss.1} parent=15 // pred_check
        %p254 = pneg %p103
      $region26: #{kl_divergence_loss.1} parent=15 // pred_check_branch
        %256 = sbr.rel (%p254) target = $region28
      $region27: #{kl_divergence_loss.1} parent=15 // pred_region
        %p257 = scmp.lt.s32.totalorder %s20, 1
        %s258 = scalar_select %p257, %s20, 1
        %p259 = scmp.lt.s32.totalorder %s21, 0
        %s260 = scalar_select %p259, %s21, 0
        %s261 = sadd.s32 %s260, %s258
        %s262 = scalar_lea.vmem %s2, %s261
      $region28: #{kl_divergence_loss.1} parent=15 // pred_fallthru
        _
      // Predicated region
      $region29: #{kl_divergence_loss.1} parent=15 // pred_check
        %p263 = pneg %p131
      $region30: #{kl_divergence_loss.1} parent=15 // pred_check_branch
        %265 = sbr.rel (%p263) target = $region32
      $region31: #{kl_divergence_loss.1} parent=15 // pred_region
        %p266 = scmp.lt.s32.totalorder %s20, 1
        %s267 = scalar_select %p266, %s20, 1
        %p268 = scmp.lt.s32.totalorder %s21, 0
        %s269 = scalar_select %p268, %s21, 0
        %s270 = sadd.s32 %s269, %s267
        %s271 = scalar_lea.vmem %s3, %s270
      $region32: #{kl_divergence_loss.1} parent=15 // pred_fallthru
        _
      // Predicated region
      $region33: #{kl_divergence_loss.1} parent=15 // pred_check
        %p272 = pneg %p159
      $region34: #{kl_divergence_loss.1} parent=15 // pred_check_branch
        %274 = sbr.rel (%p272) target = $region36
      $region35: #{kl_divergence_loss.1} parent=15 // pred_region
        %p275 = scmp.lt.s32.totalorder %s20, 1
        %s276 = scalar_select %p275, %s20, 1
        %p277 = scmp.lt.s32.totalorder %s21, 0
        %s278 = scalar_select %p277, %s21, 0
        %s279 = sadd.s32 %s278, %s276
        %s280 = scalar_lea.vmem %s4, %s279
      $region36: #{kl_divergence_loss.1} parent=15 // pred_fallthru
        _
    $region16: #{kl_divergence_loss.1} parent=5 // pred_fallthru
      _
    %p281 = scmp.le.s32.totalorder 1, %s13
    %p282 = scmp.lt.s32.totalorder %s13, 3
    %p283 = pnand %p281, %p282
    %p284 = pneg %p283
    // Predicated region
    $region37: #{kl_divergence_loss.1} parent=5 // pred_check
      _
    $region38: #{kl_divergence_loss.1} parent=5 // pred_check_branch
      %286 = sbr.rel (%p283) target = $region40
    $region39: #{kl_divergence_loss.1} parent=5 // pred_region
      %s287 = ssub.s32 %s13, 1
      %p288 = scmp.lt.s32.totalorder %s22, 1
      %s289 = scalar_select %p288, %s22, 1
      %p290 = scmp.lt.s32.totalorder %s23, 0
      %s291 = scalar_select %p290, %s23, 0
      %s292 = sadd.s32 %s291, %s289
      %s293 = scalar_lea.vmem %s0, %s292
      %p294 = pneg %p53
      %p295 = pneg %p50
      %p296 = scmp.lt.s32.totalorder %s22, 1
      %s297 = scalar_select %p296, %s22, 1
      %p298 = scmp.lt.s32.totalorder %s23, 0
      %s299 = scalar_select %p298, %s23, 0
      %s300 = sadd.s32 %s299, %s297
      %s301 = scalar_lea.vmem %s1, %s300
      %p302 = pneg %p81
      %p303 = pneg %p78
      %p304 = scmp.lt.s32.totalorder %s22, 1
      %s305 = scalar_select %p304, %s22, 1
      %p306 = scmp.lt.s32.totalorder %s23, 0
      %s307 = scalar_select %p306, %s23, 0
      %s308 = sadd.s32 %s307, %s305
      %s309 = scalar_lea.vmem %s2, %s308
      %p310 = pneg %p109
      %p311 = pneg %p106
      %p312 = scmp.lt.s32.totalorder %s22, 1
      %s313 = scalar_select %p312, %s22, 1
      %p314 = scmp.lt.s32.totalorder %s23, 0
      %s315 = scalar_select %p314, %s23, 0
      %s316 = sadd.s32 %s315, %s313
      %s317 = scalar_lea.vmem %s3, %s316
      %p318 = pneg %p137
      %p319 = pneg %p134
      %p320 = scmp.lt.s32.totalorder %s22, 1
      %s321 = scalar_select %p320, %s22, 1
      %p322 = scmp.lt.s32.totalorder %s23, 0
      %s323 = scalar_select %p322, %s23, 0
      %s324 = sadd.s32 %s323, %s321
      %s325 = scalar_lea.vmem %s4, %s324
      %p326 = pneg %p165
      %p327 = pneg %p162
      %p328 = pneg %p191
      %p329 = pneg %p188
      %p330 = scmp.lt.s32.totalorder %s22, 1
      %s331 = scalar_select %p330, %s22, 1
      %s332 = scalar_lea.vmem %s5, %s331
      %p333 = pneg %p217
      %p334 = pneg %p214
      %p335 = scmp.lt.s32.totalorder %s22, 1
      %s336 = scalar_select %p335, %s22, 1
      %s337 = scalar_lea.vmem %s6, %s336
      %p338 = scmp.lt.s32.totalorder %s22, 1
      %s339 = scalar_select %p338, %s22, 1
      %p340 = scmp.lt.s32.totalorder %s23, 0
      %s341 = scalar_select %p340, %s23, 0
      %s342 = sadd.s32 %s341, %s339
      %s343 = scalar_lea.vmem %s0, %s342
      %p344 = scmp.lt.s32.totalorder %s22, 1
      %s345 = scalar_select %p344, %s22, 1
      %p346 = scmp.lt.s32.totalorder %s23, 0
      %s347 = scalar_select %p346, %s23, 0
      %s348 = sadd.s32 %s347, %s345
      %s349 = scalar_lea.vmem %s1, %s348
      %p350 = scmp.lt.s32.totalorder %s22, 1
      %s351 = scalar_select %p350, %s22, 1
      %p352 = scmp.lt.s32.totalorder %s23, 0
      %s353 = scalar_select %p352, %s23, 0
      %s354 = sadd.s32 %s353, %s351
      %s355 = scalar_lea.vmem %s2, %s354
      %p356 = scmp.lt.s32.totalorder %s22, 1
      %s357 = scalar_select %p356, %s22, 1
      %p358 = scmp.lt.s32.totalorder %s23, 0
      %s359 = scalar_select %p358, %s23, 0
      %s360 = sadd.s32 %s359, %s357
      %s361 = scalar_lea.vmem %s3, %s360
      %p362 = scmp.lt.s32.totalorder %s22, 1
      %s363 = scalar_select %p362, %s22, 1
      %p364 = scmp.lt.s32.totalorder %s23, 0
      %s365 = scalar_select %p364, %s23, 0
      %s366 = sadd.s32 %s365, %s363
      %s367 = scalar_lea.vmem %s4, %s366
      %p368 = scmp.lt.s32.totalorder %s22, 1
      %s369 = scalar_select %p368, %s22, 1
      %s370 = scalar_lea.vmem %s5, %s369
      %p371 = scmp.lt.s32.totalorder %s22, 1
      %s372 = scalar_select %p371, %s22, 1
      %s373 = scalar_lea.vmem %s6, %s372
      %p374 = scmp.eq.s32.totalorder %s23, 0
      // Predicated region
      $region41: #{kl_divergence_loss.1} parent=39 // pred_check
        %p375 = pneg %p374
      $region42: #{kl_divergence_loss.1} parent=39 // pred_check_branch
        %377 = sbr.rel (%p375) target = $region44
      $region43: #{kl_divergence_loss.1} parent=39 // pred_region
        %vm378 = vcmask 516096
        %379 = vst.msk [vmem:[#allocation2] sm:$0x1] %vm378, 0.0
        %380 = vst.msk [vmem:[#allocation3] sm:$0x1] %vm378, 0.0
      $region44: #{kl_divergence_loss.1} parent=39 // pred_fallthru
        _
      %v381 = vld [vmem:[%s343] sm:$0x1]
      %v382 = vld [vmem:[%s349] sm:$0x1]
      %v383 = vld [vmem:[%s355] sm:$0x1]
      %v384 = vld [vmem:[%s361] sm:$0x1]
      %v385 = vld [vmem:[%s367] sm:$0x1]
      %v386 = vsub.f32 %v383, %v381
      %v387 = vsub.f32 %v382, %v384
      %v388 = vsub.f32 %v387, 0.5
      %v389 = vmul.f32 %v382, -2.0
      %v390 = vmul.f32 %v389, 1.442695
      %v391 = vpow.pop %v390
      %v392 = vmul.f32 %v391, 0.5
      %v393 = vmul.f32 %v384, 2.0
      %v394 = vmul.f32 %v393, 1.442695
      %v395 = vpow.pop %v394
      %v396 = vmul.f32 %v386, %v386
      %v397 = vadd.f32 %v395, %v396
      %v398 = vmul.f32 %v392, %v397
      %v399 = vadd.f32 %v388, %v398
      %v400 = vmul.f32 %v399, %v385
      %v401 = vld [vmem:[#allocation2] sm:$0x1]
      %v402 = vadd.f32 %v400, 0.0
      %v403 = vadd.f32 %v401, %v402
      %vm404 = vcmask 516096
      %405 = vst.msk [vmem:[#allocation2] sm:$0x1] %vm404, %v403
      %v406 = vld [vmem:[#allocation3] sm:$0x1]
      %v407 = vadd.f32 %v385, 0.0
      %v408 = vadd.f32 %v406, %v407
      %409 = vst.msk [vmem:[#allocation3] sm:$0x1] %vm404, %v408
      // Predicated region
      $region45: #{kl_divergence_loss.1} parent=39 // pred_check
        %p410 = pneg %p374
      $region46: #{kl_divergence_loss.1} parent=39 // pred_check_branch
        %412 = sbr.rel (%p410) target = $region48
      $region47: #{kl_divergence_loss.1} parent=39 // pred_region
        %v413 = vld [vmem:[#allocation2] sm:$0x1]
        %v414 = vsel %vm404, %v413, 0.0
        %415 = vadd.xlane.f32.xlu0 %v414
        %v416 = vpop.xlane.xlu0 %415
        %v417 = vrot.slane %v416, 4
        %v418 = vadd.f32 %v416, %v417
        %v419 = vrot.slane %v418, 2
        %v420 = vadd.f32 %v418, %v419
        %v421 = vrot.slane %v420, 1
        %v422 = vadd.f32 %v420, %v421
        %s423 = vtos %v422
        %v424 = vstv %s423
        %vm425 = vcmask 0
        %426 = vst.msk [vmem:[%s370] sm:$0x1] %vm425, %v424
        %v427 = vld [vmem:[#allocation3] sm:$0x1]
        %v428 = vsel %vm404, %v427, 0.0
        %429 = vadd.xlane.f32.xlu0 %v428
        %v430 = vpop.xlane.xlu0 %429
        %v431 = vrot.slane %v430, 4
        %v432 = vadd.f32 %v430, %v431
        %v433 = vrot.slane %v432, 2
        %v434 = vadd.f32 %v432, %v433
        %v435 = vrot.slane %v434, 1
        %v436 = vadd.f32 %v434, %v435
        %s437 = vtos %v436
        %v438 = vstv %s437
        %439 = vst.msk [vmem:[%s373] sm:$0x1] %vm425, %v438
      $region48: #{kl_divergence_loss.1} parent=39 // pred_fallthru
        _
      %p440 = scmp.lt.s32.totalorder %s22, 1
      %s441 = scalar_select %p440, %s22, 1
      %s442 = scalar_lea.vmem %s5, %s441
      %p443 = scmp.lt.s32.totalorder %s22, 1
      %s444 = scalar_select %p443, %s22, 1
      %s445 = scalar_lea.vmem %s6, %s444
      // Predicated region
      $region49: #{kl_divergence_loss.1} parent=39 // pred_check
        %p446 = pneg %p188
      $region50: #{kl_divergence_loss.1} parent=39 // pred_check_branch
        %448 = sbr.rel (%p446) target = $region52
      $region51: #{kl_divergence_loss.1} parent=39 // pred_region
        _
      $region52: #{kl_divergence_loss.1} parent=39 // pred_fallthru
        _
      // Predicated region
      $region53: #{kl_divergence_loss.1} parent=39 // pred_check
        %p449 = pneg %p214
      $region54: #{kl_divergence_loss.1} parent=39 // pred_check_branch
        %451 = sbr.rel (%p449) target = $region56
      $region55: #{kl_divergence_loss.1} parent=39 // pred_region
        _
      $region56: #{kl_divergence_loss.1} parent=39 // pred_fallthru
        _
    $region40: #{kl_divergence_loss.1} parent=5 // pred_fallthru
      _
    %p452 = scmp.le.s32.totalorder 2, %s13
    // Predicated region
    $region57: #{kl_divergence_loss.1} parent=5 // pred_check
      %p453 = pneg %p452
    $region58: #{kl_divergence_loss.1} parent=5 // pred_check_branch
      %455 = sbr.rel (%p453) target = $region60
    $region59: #{kl_divergence_loss.1} parent=5 // pred_region
      %s456 = ssub.s32 %s13, 2
      // Predicated region
      $region61: #{kl_divergence_loss.1} parent=59 // pred_check
        %p457 = pneg %p194
      $region62: #{kl_divergence_loss.1} parent=59 // pred_check_branch
        %459 = sbr.rel (%p457) target = $region64
      $region63: #{kl_divergence_loss.1} parent=59 // pred_region
        %p460 = scmp.lt.s32.totalorder %s24, 1
        %s461 = scalar_select %p460, %s24, 1
        %s462 = scalar_lea.vmem %s5, %s461
      $region64: #{kl_divergence_loss.1} parent=59 // pred_fallthru
        _
      // Predicated region
      $region65: #{kl_divergence_loss.1} parent=59 // pred_check
        %p463 = pneg %p220
      $region66: #{kl_divergence_loss.1} parent=59 // pred_check_branch
        %465 = sbr.rel (%p463) target = $region68
      $region67: #{kl_divergence_loss.1} parent=59 // pred_region
        %p466 = scmp.lt.s32.totalorder %s24, 1
        %s467 = scalar_select %p466, %s24, 1
        %s468 = scalar_lea.vmem %s6, %s467
      $region68: #{kl_divergence_loss.1} parent=59 // pred_fallthru
        _
    $region60: #{kl_divergence_loss.1} parent=5 // pred_fallthru
      _
  $region6: #{kl_divergence_loss.1} parent=0 // loop_footer
    %s17 = sadd.s32 1, %s13
  $region7: #{kl_divergence_loss.1} parent=0 // loop_footer_branch
    %12 = sbr.rel target = $region3
  $region8: #{kl_divergence_loss.1} parent=0 // loop_exit
    _

</llo_original>
